<compile_context>
chip_gen: v6e
topology: v6e:2x2x1
jax: 0.10.0
libtpu: 0.0.40
codegen_flags: <defaults>
</compile_context>

<pallas_src>
import functools

import jax
import jax.numpy as jnp
import numpy as np
from jax.experimental import pallas as pl
from jax.experimental.pallas import tpu as pltpu

_TILE_B = 16             # max batch rows per grid step (sublane friendly)
_IMG = 32                # LeNet-5 expects 1x32x32 inputs
_NLANE = _IMG * _IMG     # 1024 flat spatial lanes per image
_P1 = 14                 # pool1 output grid (14x14)
_C1LANE = 256            # compacted pool1 lanes (196 valid, padded to 256)
_P2 = 5                  # pool2 output grid (5x5)
_PAD = 128               # lane-dense padding for conv3/fc outputs


def _round_up(v, m):
    return ((v + m - 1) // m) * m


# ----------------------------------------------------------------------------
# pltpu.roll direction probe (run once per backend): makes the static shift
# amounts used by the main kernel correct regardless of the rotate convention.
# ----------------------------------------------------------------------------
_ROLL_PROBE_CACHE = {}


def _roll_is_jnp_like():
    """True iff pltpu.roll matches jnp.roll semantics (out[i] = in[i - shift])."""
    backend = jax.default_backend()        # keyed per backend (review concern)
    if backend not in _ROLL_PROBE_CACHE:
        def probe(x_ref, o_ref):
            o_ref[...] = pltpu.roll(x_ref[...], shift=1, axis=1)

        with jax.ensure_compile_time_eval():
            x = jnp.tile(jnp.arange(128, dtype=jnp.float32)[None, :], (8, 1))
            y = pl.pallas_call(
                probe, out_shape=jax.ShapeDtypeStruct((8, 128), jnp.float32))(x)
            _ROLL_PROBE_CACHE[backend] = bool(jax.device_get(y)[0, 0] == 127.0)
    return _ROLL_PROBE_CACHE[backend]


def _read_shifted(v, s, jnp_like):
    """y[..., L] = v[..., (L + s) % N].  Callers only use lanes with L + s < N."""
    if s == 0:
        return v
    n = v.shape[-1]
    amt = (n - s) % n if jnp_like else s % n
    return pltpu.roll(v, shift=amt, axis=v.ndim - 1)


# ----------------------------------------------------------------------------
# The fused kernel
# ----------------------------------------------------------------------------
def _lenet_kernel(x_ref, w1_ref, b1_ref, w2_ref, b2_ref,
                  g1_ref, w3_ref, b3_ref, fc1w_ref, fc1b_ref, fc2w_ref, fc2b_ref,
                  out_ref, feat_ref,
                  tap1_ref, tap2_ref, *, jnp_like, tb):
    f32 = jnp.float32
    sh = functools.partial(_read_shifted, jnp_like=jnp_like)

    x = x_ref[...]                                        # (tb, 1024) flat maps

    # ---- conv1 taps -> VMEM scratch (25 rolled copies of the input map) -----
    for i in range(5):
        for j in range(5):
            tap1_ref[i * 5 + j] = sh(x, 32 * i + j)

    # ---- conv1 (1->3) + ReLU + pool1 + lane compaction, one out-ch at a time.
    # Only one (tb, 1024) accumulator is ever live; taps stream from VMEM.
    g1 = g1_ref[...]                                      # (1024, 256) 0/1 gather
    p1d = []
    for co in range(3):
        acc = jnp.zeros((tb, _NLANE), f32)
        for t in range(25):
            acc = acc + tap1_ref[t] * w1_ref[co * 25 + t]
        h = jnp.maximum(acc + b1_ref[co], 0.0)
        # 2x2/2 max-pool: pooled (Y, X) sits on source lane 64Y+2X.
        p = jnp.maximum(jnp.maximum(h, sh(h, 1)),
                        jnp.maximum(sh(h, 32), sh(h, 33)))
        # Compact strided pooled lanes (64Y+2X) -> dense lane 14Y+X (MXU dot);
        # garbage lanes hit exact zeros in g1, so they are also wiped here.
        p1d.append(jnp.dot(p, g1, preferred_element_type=f32))   # (tb, 256)

    # ---- conv2 taps (3 ch x 25 offsets) -> VMEM scratch ----------------------
    for ci in range(3):
        for i in range(5):
            for j in range(5):
                tap2_ref[ci * 25 + i * 5 + j] = sh(p1d[ci], 14 * i + j)

    # ---- conv2 (3->8) + ReLU + pool2, one out-ch / one accumulator at a time.
    p2 = []
    for co in range(8):
        acc = jnp.zeros((tb, _C1LANE), f32)
        for t in range(75):
            acc = acc + tap2_ref[t] * w2_ref[co * 75 + t]
        h = jnp.maximum(acc + b2_ref[co], 0.0)            # valid at lane 14Y+X
        # 2x2/2 max-pool on the dense 10x10 grid: pooled (U, V) -> lane 28U+2V.
        p = jnp.maximum(jnp.maximum(h, sh(h, 1)),
                        jnp.maximum(sh(h, 14), sh(h, 15)))
        p2.append(p[:, :128])                             # all valid lanes < 128

    feat_in = jnp.concatenate(p2, axis=-1)                # (tb, 8*128 = 1024)

    # ---- conv3 == dense 200->60 as ONE fused MXU dot (padded to 128 lanes). --
    # w3_ref scatters conv3 weights onto the 28U+2V lane pattern; extra lanes
    # and the pad columns 60..127 are exact zeros.
    feat = jnp.maximum(
        jnp.dot(feat_in, w3_ref[...], preferred_element_type=f32) + b3_ref[...],
        0.0)                                              # (tb, 128)
    feat_ref[...] = feat

    # ---- fc1 + ReLU, fc2 (MXU, lane-dense 128-wide padded weights). ----------
    z = jnp.maximum(
        jnp.dot(feat, fc1w_ref[...], preferred_element_type=f32) + fc1b_ref[...],
        0.0)
    out_ref[...] = (jnp.dot(z, fc2w_ref[...], preferred_element_type=f32)
                    + fc2b_ref[...])


# ----------------------------------------------------------------------------
# Parameters: PyTorch layout + one-time kernel re-layout (hoisted out of fwd)
# ----------------------------------------------------------------------------
def init_params(key):
    ks = jax.random.split(key, 10)

    def w(k, shape, fan_in):
        return jax.random.normal(k, shape, jnp.float32) / np.sqrt(fan_in)

    return {
        "conv1_w": w(ks[0], (3, 1, 5, 5), 25), "conv1_b": w(ks[1], (3,), 25),
        "conv2_w": w(ks[2], (8, 3, 5, 5), 75), "conv2_b": w(ks[3], (8,), 75),
        "conv3_w": w(ks[4], (60, 8, 5, 5), 200), "conv3_b": w(ks[5], (60,), 200),
        "fc1_w": w(ks[6], (42, 60), 60), "fc1_b": w(ks[7], (42,), 60),
        "fc2_w": w(ks[8], (10, 42), 42), "fc2_b": w(ks[9], (10,), 42),
    }


def prepare_params(params):
    """One-time re-layout of PyTorch-shaped weights into kernel form."""
    f32 = np.float32

    # pool1 compaction gather matrix: g1[64Y+2X, 14Y+X] = 1, Y, X < 14.
    g1 = np.zeros((_NLANE, _C1LANE), f32)
    ys, xs = np.meshgrid(np.arange(_P1), np.arange(_P1), indexing="ij")
    g1[(64 * ys + 2 * xs).ravel(), (_P1 * ys + xs).ravel()] = 1.0

    # conv3 scatter matrix: w3_mat[c*128 + 28u+2v, co] = conv3_w[co, c, u, v],
    # output columns padded 60 -> 128.
    w3 = np.asarray(params["conv3_w"], f32)                      # (60, 8, 5, 5)
    us, vs = np.meshgrid(np.arange(_P2), np.arange(_P2), indexing="ij")
    p2_lanes = (28 * us + 2 * vs).ravel()                        # (25,)
    w3_mat = np.zeros((8 * 128, _PAD), f32)
    for c in range(8):
        w3_mat[c * 128 + p2_lanes, :60] = w3[:, c].reshape(60, 25).T

    b3 = np.zeros((1, _PAD), f32)
    b3[0, :60] = np.asarray(params["conv3_b"], f32)
    fc1_wt = np.zeros((_PAD, _PAD), f32)
    fc1_wt[:60, :42] = np.asarray(params["fc1_w"], f32).T
    fc1_b = np.zeros((1, _PAD), f32)
    fc1_b[0, :42] = np.asarray(params["fc1_b"], f32)
    fc2_wt = np.zeros((_PAD, _PAD), f32)
    fc2_wt[:42, :10] = np.asarray(params["fc2_w"], f32).T
    fc2_b = np.zeros((1, _PAD), f32)
    fc2_b[0, :10] = np.asarray(params["fc2_b"], f32)

    return {
        "w1_flat": jnp.asarray(np.asarray(params["conv1_w"], f32).ravel()),  # (75,)  SMEM
        "b1": jnp.asarray(np.asarray(params["conv1_b"], f32)),               # (3,)   SMEM
        "w2_flat": jnp.asarray(np.asarray(params["conv2_w"], f32).ravel()),  # (600,) SMEM
        "b2": jnp.asarray(np.asarray(params["conv2_b"], f32)),               # (8,)   SMEM
        "g1": jnp.asarray(g1),                                               # (1024, 256)
        "w3_mat": jnp.asarray(w3_mat),                                       # (1024, 128)
        "b3_row": jnp.asarray(b3),
        "fc1_wt": jnp.asarray(fc1_wt), "fc1_b_row": jnp.asarray(fc1_b),
        "fc2_wt": jnp.asarray(fc2_wt), "fc2_b_row": jnp.asarray(fc2_b),
    }


# ----------------------------------------------------------------------------
# Forward wrapper (single pallas_call)
# ----------------------------------------------------------------------------
def lenet5half_forward(img_nchw, params, out_feature=False):
    prep = params if "g1" in params else prepare_params(params)

    B = img_nchw.shape[0]
    x = img_nchw.astype(jnp.float32).reshape(B, -1)
    assert x.shape[1] == _NLANE, "LeNet5Half expects (B, 1, 32, 32) inputs"

    # Shrink the tile for tiny batches (less padding); for large batches the
    # grid keeps >= 2 steps once B > _TILE_B so v7x's two TensorCores both work.
    tile_b = min(_TILE_B, _round_up(B, 8))
    bp = _round_up(B, tile_b)
    if bp != B:
        x = jnp.pad(x, ((0, bp - B), (0, 0)))

    kernel = functools.partial(
        _lenet_kernel, jnp_like=_roll_is_jnp_like(), tb=tile_b)
    smem = pl.BlockSpec(memory_space=pltpu.MemorySpace.SMEM)

    out, feat = pl.pallas_call(
        kernel,
        grid=(bp // tile_b,),
        in_specs=[
            pl.BlockSpec((tile_b, _NLANE), lambda i: (i, 0)),      # image tile
            smem, smem, smem, smem,                                # w1, b1, w2, b2
            pl.BlockSpec((_NLANE, _C1LANE), lambda i: (0, 0)),     # pool1 gather mat
            pl.BlockSpec((8 * 128, _PAD), lambda i: (0, 0)),       # conv3 scatter mat
            pl.BlockSpec((1, _PAD), lambda i: (0, 0)),             # b3 (padded)
            pl.BlockSpec((_PAD, _PAD), lambda i: (0, 0)),          # fc1 w (padded)
            pl.BlockSpec((1, _PAD), lambda i: (0, 0)),             # fc1 b (padded)
            pl.BlockSpec((_PAD, _PAD), lambda i: (0, 0)),          # fc2 w (padded)
            pl.BlockSpec((1, _PAD), lambda i: (0, 0)),             # fc2 b (padded)
        ],
        out_specs=[
            pl.BlockSpec((tile_b, _PAD), lambda i: (i, 0)),        # logits (lane-dense)
            pl.BlockSpec((tile_b, _PAD), lambda i: (i, 0)),        # feature (lane-dense)
        ],
        out_shape=[
            jax.ShapeDtypeStruct((bp, _PAD), jnp.float32),
            jax.ShapeDtypeStruct((bp, _PAD), jnp.float32),
        ],
        scratch_shapes=[
            pltpu.VMEM((25, tile_b, _NLANE), jnp.float32),         # conv1 taps
            pltpu.VMEM((75, tile_b, _C1LANE), jnp.float32),        # conv2 taps
        ],
        compiler_params=pltpu.CompilerParams(
            dimension_semantics=("parallel",),
            vmem_limit_bytes=32 * 1024 * 1024),
    )(x, prep["w1_flat"], prep["b1"], prep["w2_flat"], prep["b2"],
      prep["g1"], prep["w3_mat"], prep["b3_row"],
      prep["fc1_wt"], prep["fc1_b_row"], prep["fc2_wt"], prep["fc2_b_row"])

    logits = out[:B, :10]
    if out_feature:
        return logits, feat[:B, :60]
    return logits


# ----------------------------------------------------------------------------
# Pure-JAX reference for verification
# ----------------------------------------------------------------------------
def ref_forward(img_nchw, params, out_feature=False):
    def conv(x, w, b):
        y = jax.lax.conv_general_dilated(
            x, w, window_strides=(1, 1), padding="VALID",
            dimension_numbers=("NCHW", "OIHW", "NCHW"))
        return jax.nn.relu(y + b.reshape(1, -1, 1, 1))

    def pool(x):
        b, c, h, w = x.shape
        return x.reshape(b, c, h // 2, 2, w // 2, 2).max(axis=(3, 5))

    x = img_nchw.astype(jnp.float32)
    x = pool(conv(x, params["conv1_w"], params["conv1_b"]))
    x = pool(conv(x, params["conv2_w"], params["conv2_b"]))
    x = conv(x, params["conv3_w"], params["conv3_b"])
    feat = x.reshape(-1, 60)
    out = jax.nn.relu(feat @ params["fc1_w"].T + params["fc1_b"])
    out = out @ params["fc2_w"].T + params["fc2_b"]
    if out_feature:
        return out, feat
    return out


if __name__ == "__main__":
    key = jax.random.PRNGKey(0)
    k_img, k_par = jax.random.split(key)
    img = jax.random.normal(k_img, (2, 1, 32, 32), jnp.float32)   # NCHW like PyTorch
    params = init_params(k_par)
    prep = prepare_params(params)                                  # one-time re-layout

    out, feat = lenet5half_forward(img, prep, out_feature=True)
    out = jax.block_until_ready(out)
    feat = jax.block_until_ready(feat)
    assert out.shape == (2, 10) and feat.shape == (2, 60), (out.shape, feat.shape)

    ref_out, ref_feat = ref_forward(img, params, out_feature=True)
    # Tolerance covers possible bf16-pass MXU rounding (default dot precision)
    # in the compaction / conv3 / fc matmuls while still catching real bugs.
    np.testing.assert_allclose(np.asarray(out), np.asarray(ref_out),
                               rtol=2e-2, atol=2e-2)
    np.testing.assert_allclose(np.asarray(feat), np.asarray(ref_feat),
                               rtol=2e-2, atol=2e-2)

    print("KERNEL_OK")
</pallas_src>

<mosaic_0001>
module attributes {stable_mosaic.version = 11 : i64} {
  func.func @probe(%arg0: memref<8x128xf32, #tpu.memory_space<vmem>>, %arg1: memref<8x128xf32, #tpu.memory_space<vmem>>) attributes {dimension_semantics = [], scalar_prefetch = 0 : i64, scratch_operands = 0 : i64, tpu.core_type = #tpu.core_type<tc>} {
    %c0 = arith.constant 0 : index
    %c0_0 = arith.constant 0 : index
    %0 = vector.load %arg0[%c0, %c0_0] : memref<8x128xf32, #tpu.memory_space<vmem>>, vector<8x128xf32>
    %c1_i32 = arith.constant 1 : i32
    %1 = tpu.dynamic_rotate %0 by %c1_i32 dim 1 : vector<8x128xf32>, i32 -> vector<8x128xf32>
    %c0_1 = arith.constant 0 : index
    %c0_2 = arith.constant 0 : index
    %2 = vector.load %arg1[%c0_1, %c0_2] : memref<8x128xf32, #tpu.memory_space<vmem>>, vector<8x128xf32>
    tpu.vector_store %arg1[%c0_1, %c0_2], %1 {strides = array<i32>} : memref<8x128xf32, #tpu.memory_space<vmem>>, vector<8x128xf32>,
    return
  }
}

</mosaic_0001>

<llo_original>
// kernel: tpu_custom_call.1
$region0: #{tpu_custom_call.1}
  #allocation0 [shape = 'u32[]', space=smem, size = 0x4, offset = 0x4, fixed_abs, tag = 'smem constant byte address 0x4 - core index']
  #allocation1 [shape = 'u32[144,128]{1,0:T(1,128)}', space=vmem, size = 0x12000, scoped, tag = 'internal scratch']
  %s0 = inlined_call_operand.hbm [shape: f32[8,128], index: 0, kind: input, shape index: {}]
  %s1 = inlined_call_operand.hbm [shape: f32[8,128], index: 1, kind: output, shape index: {}]
  %s2 = sld [smem:[#allocation0]]
  $region18: #{tpu_custom_call.1} parent=0
    _
  %s4 = ssub.s32 1, %s2
  %s5 = scalar_select 0, %s4, %s2
  $region1: #{tpu_custom_call.1} parent=0
    #allocation2 [shape = 'u8[4096]{0}', space=vmem, size = 0x1000, scoped, tag = 'input window, operand 0, single buffered']
    #allocation3 [shape = 's32[1]{0}', space=sflag, size = 0x4, scoped, tag = 'scoped memory for tpu_custom_call.1']
    #allocation4 [shape = 's32[1]{0}', space=sflag, size = 0x4, scoped, tag = 'scoped memory for tpu_custom_call.1']
    #allocation5 [shape = 'u8[4096]{0}', space=vmem, size = 0x1000, scoped, tag = 'output window, operand 0, single buffered']
    %6 = vsyncpa [#allocation3], 0
    %7 = vsyncpa [#allocation4], 0
    // Predicated region
    $region2: #{tpu_custom_call.1} parent=1 // pred_check
      _
    $region3: #{tpu_custom_call.1} parent=1 // pred_check_branch
      %9 = sbr.rel (0) target = $region5
    $region4: #{tpu_custom_call.1} parent=1 // pred_region
      %s11 = ssub.s32 128, 128
      %12 = vsyncadd [#allocation3], %s11
      %s14 = sshll.u32 [#allocation2], 4
      %s15 = int_to_ptr.vmem [resolvable:$true] %s14
      %17 = dma.hbm_to_vmem [thread:$0]  %s0, 128, %s15, [#allocation3]
    $region5: #{tpu_custom_call.1} parent=1 // pred_fallthru
      _
    // Predicated region
    $region6: #{tpu_custom_call.1} parent=1 // pred_check
      _
    $region7: #{tpu_custom_call.1} parent=1 // pred_check_branch
      %19 = sbr.rel (0) target = $region9
    $region8: #{tpu_custom_call.1} parent=1 // pred_region
      %20 = dma.done [#allocation3], 128
    $region9: #{tpu_custom_call.1} parent=1 // pred_fallthru
      _
    %v21 = vld [vmem:[#allocation2] sm:$0xff]
    %22 = vrot.lane.b32.xlu0 %v21, 1
    %v23 = vpop.permute.xlu0 %22
    %24 = vst [vmem:[#allocation5] sm:$0xff] %v23
    // Predicated region
    $region10: #{tpu_custom_call.1} parent=1 // pred_check
      _
    $region11: #{tpu_custom_call.1} parent=1 // pred_check_branch
      %26 = sbr.rel (0) target = $region13
    $region12: #{tpu_custom_call.1} parent=1 // pred_region
      %s28 = ssub.s32 128, 128
      %29 = vsyncadd [#allocation4], %s28
      %s31 = sshll.u32 [#allocation5], 4
      %s32 = int_to_ptr.vmem [resolvable:$true] %s31
      %34 = dma.vmem_to_hbm [thread:$0]  %s32, 128, %s1, [#allocation4]
    $region13: #{tpu_custom_call.1} parent=1 // pred_fallthru
      _
    // Predicated region
    $region14: #{tpu_custom_call.1} parent=1 // pred_check
      _
    $region15: #{tpu_custom_call.1} parent=1 // pred_check_branch
      %36 = sbr.rel (0) target = $region17
    $region16: #{tpu_custom_call.1} parent=1 // pred_region
      %37 = dma.done [#allocation4], 128
    $region17: #{tpu_custom_call.1} parent=1 // pred_fallthru
      _
    %38 = vsyncpa [#allocation3], 1
    %39 = vsyncpa [#allocation4], 1

</llo_original>
